<compile_context>
chip_gen: v7x
topology: tpu7x:2x2x1
jax: 0.10.0
libtpu: 0.0.40
codegen_flags: <defaults>
</compile_context>

<pallas_src>
import functools

import jax
import jax.numpy as jnp
from jax.experimental import pallas as pl
from jax.experimental.pallas import tpu as pltpu

_LANE = 128
_DEFAULT_BLOCK_ROWS = 8192   # (8192, 128) f32 tile = 4 MiB per input per buffer


def _num_tensorcores():
    """2 on v7x-class chips (2 TC/chip), else 1. Conservative on failure."""
    try:
        kind = (getattr(jax.devices()[0], "device_kind", "") or "").lower()
        if "v7" in kind or "tpu7" in kind:
            return 2
    except Exception:
        pass
    return 1


def _dice_partial_kernel(p_ref, t_ref, inter_ref, sums_ref, *,
                         rows, block_rows, blocks_per_split, total_blocks,
                         needs_mask):
    c = pl.program_id(0)   # core split (CORE_PARALLEL on v7x, size 1 otherwise)
    j = pl.program_id(1)   # reduction over blocks (arbitrary)

    @pl.when(j == 0)
    def _():
        inter_ref[...] = jnp.zeros_like(inter_ref)
        sums_ref[...] = jnp.zeros_like(sums_ref)

    p = p_ref[...].astype(jnp.float32)
    t = t_ref[...].astype(jnp.float32)

    groups = block_rows // 8

    def accumulate(pv, tv):
        # (block_rows, 128) -> (groups, 8, 128) is a free sublane-split reshape;
        # the axis-0 sum is pure whole-vreg VALU adds (no XLU sublane reduce).
        inter_ref[...] += jnp.sum(
            (pv * tv).reshape(groups, 8, _LANE), axis=0, keepdims=True)
        sums_ref[...] += jnp.sum(
            (pv + tv).reshape(groups, 8, _LANE), axis=0, keepdims=True)

    if not needs_mask:
        accumulate(p, t)
    else:
        gb = c * blocks_per_split + j   # unclamped global block index

        # Fast path: interior blocks need no masking at all.
        @pl.when(gb < total_blocks - 1)
        def _():
            accumulate(p, t)

        # Slow path: the final (possibly partial) block and any clamped
        # duplicate overhang blocks (gb >= total_blocks) — zero invalid rows.
        @pl.when(gb >= total_blocks - 1)
        def _():
            row0 = gb * block_rows
            row_idx = row0 + jax.lax.broadcasted_iota(jnp.int32, p.shape, 0)
            valid = row_idx < rows
            accumulate(jnp.where(valid, p, 0.0), jnp.where(valid, t, 0.0))


def dice_loss(preds, targets, smooth=1.0, *, block_rows=_DEFAULT_BLOCK_ROWS):
    """Pallas implementation of DiceLoss.forward (returns scalar f32)."""
    block_rows = max(8, (int(block_rows) // 8) * 8)

    p_flat = preds.reshape(-1)
    t_flat = targets.reshape(-1)
    n = p_flat.shape[0]

    rem = n % _LANE
    n_main = n - rem

    # Tail (< 128 elements): tiny wrapper-side reduction instead of a full-array
    # jnp.pad copy (which would double HBM traffic for this mem-bound kernel).
    if rem:
        p_tail = p_flat[n_main:].astype(jnp.float32)
        t_tail = t_flat[n_main:].astype(jnp.float32)
        tail_inter = jnp.sum(p_tail * t_tail)
        tail_total = jnp.sum(p_tail) + jnp.sum(t_tail)
    else:
        tail_inter = jnp.float32(0.0)
        tail_total = jnp.float32(0.0)

    if n_main == 0:
        intersection = tail_inter
        total = tail_total
    else:
        rows = n_main // _LANE
        p2 = p_flat[:n_main].reshape(rows, _LANE)
        t2 = t_flat[:n_main].reshape(rows, _LANE)

        rows8 = ((rows + 7) // 8) * 8            # round to sublane multiple
        block_rows_eff = rows8 if rows8 <= block_rows else block_rows
        total_blocks = pl.cdiv(rows, block_rows_eff)

        n_cores = _num_tensorcores()
        n_split = min(n_cores, total_blocks) if (n_cores > 1 and total_blocks > 1) else 1
        blocks_per_split = pl.cdiv(total_blocks, n_split)
        needs_mask = n_split * blocks_per_split * block_rows_eff > rows

        def in_index_map(c, j):
            # Clamp so overhang (fully masked duplicate) blocks never index OOB.
            return (jnp.minimum(c * blocks_per_split + j, total_blocks - 1), 0)

        kernel = functools.partial(
            _dice_partial_kernel,
            rows=rows,
            block_rows=block_rows_eff,
            blocks_per_split=blocks_per_split,
            total_blocks=total_blocks,
            needs_mask=needs_mask,
        )

        if n_split > 1 and hasattr(pltpu, "CORE_PARALLEL"):
            dim_sem = (pltpu.CORE_PARALLEL, pltpu.ARBITRARY)
        else:
            dim_sem = ("arbitrary", "arbitrary")

        tile_bytes = block_rows_eff * _LANE * p2.dtype.itemsize
        # 2 inputs x 2 pipeline buffers + accumulators/margin; fits every gen.
        vmem_limit = min(4 * int(tile_bytes) + (8 << 20), 64 << 20)

        bytes_accessed = int(p2.size * p2.dtype.itemsize +
                             t2.size * t2.dtype.itemsize)
        inter_p, sums_p = pl.pallas_call(
            kernel,
            out_shape=(
                jax.ShapeDtypeStruct((n_split, 8, _LANE), jnp.float32),
                jax.ShapeDtypeStruct((n_split, 8, _LANE), jnp.float32),
            ),
            grid_spec=pltpu.PrefetchScalarGridSpec(
                num_scalar_prefetch=0,
                grid=(n_split, blocks_per_split),
                in_specs=[
                    pl.BlockSpec((block_rows_eff, _LANE), in_index_map),
                    pl.BlockSpec((block_rows_eff, _LANE), in_index_map),
                ],
                out_specs=(
                    pl.BlockSpec((1, 8, _LANE), lambda c, j: (c, 0, 0)),
                    pl.BlockSpec((1, 8, _LANE), lambda c, j: (c, 0, 0)),
                ),
            ),
            compiler_params=pltpu.CompilerParams(
                dimension_semantics=dim_sem,
                vmem_limit_bytes=vmem_limit,
            ),
            cost_estimate=pl.CostEstimate(
                flops=3 * p2.size, transcendentals=0,
                bytes_accessed=bytes_accessed,
            ),
        )(p2, t2)

        # Final 8 -> 1 sublane + cross-lane reduce and the smooth/ratio math are
        # paid once, outside the kernel.
        intersection = jnp.sum(inter_p) + tail_inter
        total = jnp.sum(sums_p) + tail_total

    dice_coef = (2.0 * intersection + smooth) / (total + smooth)
    return 1.0 - dice_coef


def _dice_loss_ref(preds, targets, smooth=1.0):
    p = preds.reshape(-1).astype(jnp.float32)
    t = targets.reshape(-1).astype(jnp.float32)
    inter = jnp.sum(p * t)
    dice_coef = (2.0 * inter + smooth) / (jnp.sum(p) + jnp.sum(t) + smooth)
    return 1.0 - dice_coef


if __name__ == "__main__":
    key = jax.random.PRNGKey(0)
    k1, k2, k3, k4, k5, k6 = jax.random.split(key, 6)

    # Case 1: typical segmentation-style inputs (lane-aligned, single block).
    preds = jax.nn.sigmoid(jax.random.normal(k1, (2, 4, 16, 16), dtype=jnp.float32))
    targets = (jax.random.uniform(k2, (2, 4, 16, 16)) > 0.5).astype(jnp.float32)
    loss = jax.block_until_ready(dice_loss(preds, targets, smooth=1.0))
    ref = jax.block_until_ready(_dice_loss_ref(preds, targets, smooth=1.0))
    assert abs(float(loss) - float(ref)) < 1e-5, (loss, ref)

    # Case 2: multi-block grid, last-block masking (and 2-way split on v7x).
    preds2 = jax.nn.sigmoid(jax.random.normal(k3, (2, 3, 16, 16), dtype=jnp.float32))
    targets2 = (jax.random.uniform(k4, (2, 3, 16, 16)) > 0.5).astype(jnp.float32)
    loss2 = jax.block_until_ready(dice_loss(preds2, targets2, smooth=1.0, block_rows=8))
    ref2 = jax.block_until_ready(_dice_loss_ref(preds2, targets2, smooth=1.0))
    assert abs(float(loss2) - float(ref2)) < 1e-5, (loss2, ref2)

    # Case 3: non-lane-aligned input -> wrapper tail reduction + rounded-up
    # (partial) single block with in-kernel row masking.
    preds3 = jax.nn.sigmoid(jax.random.normal(k5, (3, 5, 7, 11), dtype=jnp.float32))
    targets3 = (jax.random.uniform(k6, (3, 5, 7, 11)) > 0.5).astype(jnp.float32)
    loss3 = jax.block_until_ready(dice_loss(preds3, targets3, smooth=1.0))
    ref3 = jax.block_until_ready(_dice_loss_ref(preds3, targets3, smooth=1.0))
    assert abs(float(loss3) - float(ref3)) < 1e-5, (loss3, ref3)

    print("KERNEL_OK")
</pallas_src>

<mosaic_0001>
module attributes {stable_mosaic.version = 11 : i64} {
  func.func @_dice_partial_kernel(%arg0: i32, %arg1: i32, %arg2: memref<16x128xf32, #tpu.memory_space<vmem>>, %arg3: memref<16x128xf32, #tpu.memory_space<vmem>>, %arg4: memref<1x8x128xf32, #tpu.memory_space<vmem>>, %arg5: memref<1x8x128xf32, #tpu.memory_space<vmem>>) attributes {dimension_semantics = [#tpu.dimension_semantics<arbitrary>, #tpu.dimension_semantics<arbitrary>], iteration_bounds = array<i64: 1, 1>, scalar_prefetch = 0 : i64, scratch_operands = 0 : i64, tpu.core_type = #tpu.core_type<tc>, window_params = [{transform_indices = @transform_0, window_bounds = array<i64: 16, 128>}, {transform_indices = @transform_1, window_bounds = array<i64: 16, 128>}, {transform_indices = @transform_2, window_bounds = array<i64: 1, 8, 128>}, {transform_indices = @transform_3, window_bounds = array<i64: 1, 8, 128>}]} {
    %c0_i32 = arith.constant 0 : i32
    %0 = arith.cmpi eq, %arg1, %c0_i32 : i32
    %1 = arith.extui %0 : i1 to i32
    %c0_i32_0 = arith.constant 0 : i32
    %2 = arith.cmpi ne, %1, %c0_i32_0 : i32
    scf.if %2 {
      %cst_17 = arith.constant 0.000000e+00 : f32
      %19 = vector.broadcast %cst_17 : f32 to vector<1x8x128xf32>
      %c0_18 = arith.constant 0 : index
      %c0_19 = arith.constant 0 : index
      %c0_20 = arith.constant 0 : index
      %20 = vector.load %arg4[%c0_18, %c0_19, %c0_20] : memref<1x8x128xf32, #tpu.memory_space<vmem>>, vector<1x8x128xf32>
      tpu.vector_store %arg4[%c0_18, %c0_19, %c0_20], %19 {strides = array<i32>} : memref<1x8x128xf32, #tpu.memory_space<vmem>>, vector<1x8x128xf32>,
      %cst_21 = arith.constant 0.000000e+00 : f32
      %21 = vector.broadcast %cst_21 : f32 to vector<1x8x128xf32>
      %c0_22 = arith.constant 0 : index
      %c0_23 = arith.constant 0 : index
      %c0_24 = arith.constant 0 : index
      %22 = vector.load %arg5[%c0_22, %c0_23, %c0_24] : memref<1x8x128xf32, #tpu.memory_space<vmem>>, vector<1x8x128xf32>
      tpu.vector_store %arg5[%c0_22, %c0_23, %c0_24], %21 {strides = array<i32>} : memref<1x8x128xf32, #tpu.memory_space<vmem>>, vector<1x8x128xf32>,
    } else {
    }
    %c0 = arith.constant 0 : index
    %c0_1 = arith.constant 0 : index
    %3 = vector.load %arg2[%c0, %c0_1] : memref<16x128xf32, #tpu.memory_space<vmem>>, vector<16x128xf32>
    %c0_2 = arith.constant 0 : index
    %c0_3 = arith.constant 0 : index
    %4 = vector.load %arg3[%c0_2, %c0_3] : memref<16x128xf32, #tpu.memory_space<vmem>>, vector<16x128xf32>
    %c0_4 = arith.constant 0 : index
    %c0_5 = arith.constant 0 : index
    %c0_6 = arith.constant 0 : index
    %5 = vector.load %arg4[%c0_4, %c0_5, %c0_6] : memref<1x8x128xf32, #tpu.memory_space<vmem>>, vector<1x8x128xf32>
    %6 = arith.mulf %3, %4 : vector<16x128xf32>
    %7 = vector.shape_cast %6 : vector<16x128xf32> to vector<2x8x128xf32>
    %cst = arith.constant dense<0.000000e+00> : vector<8x128xf32>
    %8 = vector.multi_reduction <add>, %7, %cst [0] : vector<2x8x128xf32> to vector<8x128xf32>
    %9 = vector.shape_cast %8 : vector<8x128xf32> to vector<1x8x128xf32>
    %10 = arith.addf %5, %9 : vector<1x8x128xf32>
    %c0_7 = arith.constant 0 : index
    %c0_8 = arith.constant 0 : index
    %c0_9 = arith.constant 0 : index
    %11 = vector.load %arg4[%c0_7, %c0_8, %c0_9] : memref<1x8x128xf32, #tpu.memory_space<vmem>>, vector<1x8x128xf32>
    tpu.vector_store %arg4[%c0_7, %c0_8, %c0_9], %10 {strides = array<i32>} : memref<1x8x128xf32, #tpu.memory_space<vmem>>, vector<1x8x128xf32>,
    %c0_10 = arith.constant 0 : index
    %c0_11 = arith.constant 0 : index
    %c0_12 = arith.constant 0 : index
    %12 = vector.load %arg5[%c0_10, %c0_11, %c0_12] : memref<1x8x128xf32, #tpu.memory_space<vmem>>, vector<1x8x128xf32>
    %13 = arith.addf %3, %4 : vector<16x128xf32>
    %14 = vector.shape_cast %13 : vector<16x128xf32> to vector<2x8x128xf32>
    %cst_13 = arith.constant dense<0.000000e+00> : vector<8x128xf32>
    %15 = vector.multi_reduction <add>, %14, %cst_13 [0] : vector<2x8x128xf32> to vector<8x128xf32>
    %16 = vector.shape_cast %15 : vector<8x128xf32> to vector<1x8x128xf32>
    %17 = arith.addf %12, %16 : vector<1x8x128xf32>
    %c0_14 = arith.constant 0 : index
    %c0_15 = arith.constant 0 : index
    %c0_16 = arith.constant 0 : index
    %18 = vector.load %arg5[%c0_14, %c0_15, %c0_16] : memref<1x8x128xf32, #tpu.memory_space<vmem>>, vector<1x8x128xf32>
    tpu.vector_store %arg5[%c0_14, %c0_15, %c0_16], %17 {strides = array<i32>} : memref<1x8x128xf32, #tpu.memory_space<vmem>>, vector<1x8x128xf32>,
    return
  }
  func.func @transform_0(%arg0: i32, %arg1: i32) -> (i32, i32) {
    %c1_i32 = arith.constant 1 : i32
    %0 = arith.muli %arg0, %c1_i32 : i32
    %1 = arith.addi %0, %arg1 : i32
    %c0_i32 = arith.constant 0 : i32
    %2 = arith.minsi %1, %c0_i32 : i32
    %c0_i32_0 = arith.constant 0 : i32
    %c0_i32_1 = arith.constant 0 : i32
    return %2, %c0_i32_0 : i32, i32
  }
  func.func @transform_1(%arg0: i32, %arg1: i32) -> (i32, i32) {
    %c1_i32 = arith.constant 1 : i32
    %0 = arith.muli %arg0, %c1_i32 : i32
    %1 = arith.addi %0, %arg1 : i32
    %c0_i32 = arith.constant 0 : i32
    %2 = arith.minsi %1, %c0_i32 : i32
    %c0_i32_0 = arith.constant 0 : i32
    %c0_i32_1 = arith.constant 0 : i32
    return %2, %c0_i32_0 : i32, i32
  }
  func.func @transform_2(%arg0: i32, %arg1: i32) -> (i32, i32, i32) {
    %c0_i32 = arith.constant 0 : i32
    %c0_i32_0 = arith.constant 0 : i32
    %c0_i32_1 = arith.constant 0 : i32
    return %arg0, %c0_i32, %c0_i32_0 : i32, i32, i32
  }
  func.func @transform_3(%arg0: i32, %arg1: i32) -> (i32, i32, i32) {
    %c0_i32 = arith.constant 0 : i32
    %c0_i32_0 = arith.constant 0 : i32
    %c0_i32_1 = arith.constant 0 : i32
    return %arg0, %c0_i32, %c0_i32_0 : i32, i32, i32
  }
}

</mosaic_0001>

<llo_original>
// kernel: tpu_custom_call.1
$region0: #{tpu_custom_call.1}
  #allocation0 [shape = 'u32[]', space=smem, size = 0x4, offset = 0x4, fixed_abs, tag = 'smem constant byte address 0x4 - core index']
  #allocation1 [shape = 'u32[144,128]{1,0:T(1,128)}', space=vmem, size = 0x12000, scoped, tag = 'internal scratch']
  %s0 = inlined_call_operand.hbm [shape: f32[16,128], index: 0, kind: input, shape index: {}]
  %s1 = inlined_call_operand.hbm [shape: f32[16,128], index: 1, kind: input, shape index: {}]
  %s2 = inlined_call_operand.hbm [shape: f32[1,8,128], index: 2, kind: output, shape index: {0}]
  %s3 = inlined_call_operand.hbm [shape: f32[1,8,128], index: 3, kind: output, shape index: {1}]
  %4 = xla_tuple %s2, %s3
  %s5 = sld [smem:[#allocation0]]
  $region38: #{tpu_custom_call.1} parent=0
    _
  %s7 = ssub.s32 1, %s5
  %s8 = scalar_select 0, %s7, %s5
  $region1: #{tpu_custom_call.1} parent=0
    #allocation2 [shape = 'u8[8192]{0}', space=vmem, size = 0x2000, scoped, tag = 'input window, operand 0, single buffered']
    #allocation3 [shape = 's32[1]{0}', space=sflag, size = 0x4, scoped, tag = 'scoped memory for tpu_custom_call.1']
    #allocation4 [shape = 's32[1]{0}', space=sflag, size = 0x4, scoped, tag = 'scoped memory for tpu_custom_call.1']
    #allocation5 [shape = 'u8[8192]{0}', space=vmem, size = 0x2000, scoped, tag = 'input window, operand 1, single buffered']
    #allocation6 [shape = 's32[1]{0}', space=sflag, size = 0x4, scoped, tag = 'scoped memory for tpu_custom_call.1']
    #allocation7 [shape = 'u8[4096]{0}', space=vmem, size = 0x1000, scoped, tag = 'output window, operand 0, single buffered']
    #allocation8 [shape = 'u8[4096]{0}', space=vmem, size = 0x1000, scoped, tag = 'output window, operand 1, single buffered']
    #allocation9 [shape = 's32[1]{0}', space=sflag, size = 0x4, scoped, tag = 'scoped memory for tpu_custom_call.1']
    %9 = vsyncpa [#allocation3], 0
    %10 = vsyncpa [#allocation6], 0
    %11 = vsyncpa [#allocation4], 0
    %12 = vsyncpa [#allocation9], 0
    // Predicated region
    $region2: #{tpu_custom_call.1} parent=1 // pred_check
      _
    $region3: #{tpu_custom_call.1} parent=1 // pred_check_branch
      %14 = sbr.rel (0) target = $region5
    $region4: #{tpu_custom_call.1} parent=1 // pred_region
      %s15 = sadd.s32 0, 0
      %p16 = scmp.lt.s32.totalorder %s15, 0
      %s17 = scalar_select %p16, %s15, 0
      %s18 = smul.u32 2, %s17
      %s20 = ssub.s32 256, 256
      %21 = vsyncadd [#allocation3], %s20
      %s22 = smul.addr %s18, 128
      %s23 = scalar_lea.hbm %s0, %s22
      %s24 = sshll.u32 [#allocation2], 4
      %s25 = int_to_ptr.vmem [resolvable:$true] %s24
      %30 = dma.hbm_to_vmem [thread:$0]  %s23, 256, %s25, [#allocation3], 128, 128, 8
    $region5: #{tpu_custom_call.1} parent=1 // pred_fallthru
      _
    // Predicated region
    $region6: #{tpu_custom_call.1} parent=1 // pred_check
      _
    $region7: #{tpu_custom_call.1} parent=1 // pred_check_branch
      %32 = sbr.rel (0) target = $region9
    $region8: #{tpu_custom_call.1} parent=1 // pred_region
      %s33 = sadd.s32 0, 0
      %p34 = scmp.lt.s32.totalorder %s33, 0
      %s35 = scalar_select %p34, %s33, 0
      %s36 = smul.u32 2, %s35
      %s38 = ssub.s32 256, 256
      %39 = vsyncadd [#allocation6], %s38
      %s40 = smul.addr %s36, 128
      %s41 = scalar_lea.hbm %s1, %s40
      %s42 = sshll.u32 [#allocation5], 4
      %s43 = int_to_ptr.vmem [resolvable:$true] %s42
      %48 = dma.hbm_to_vmem [thread:$0]  %s41, 256, %s43, [#allocation6], 128, 128, 8
    $region9: #{tpu_custom_call.1} parent=1 // pred_fallthru
      _
    // Predicated region
    $region10: #{tpu_custom_call.1} parent=1 // pred_check
      _
    $region11: #{tpu_custom_call.1} parent=1 // pred_check_branch
      %50 = sbr.rel (0) target = $region13
    $region12: #{tpu_custom_call.1} parent=1 // pred_region
      %51 = dma.done [#allocation3], 256
    $region13: #{tpu_custom_call.1} parent=1 // pred_fallthru
      _
    // Predicated region
    $region14: #{tpu_custom_call.1} parent=1 // pred_check
      _
    $region15: #{tpu_custom_call.1} parent=1 // pred_check_branch
      %53 = sbr.rel (0) target = $region17
    $region16: #{tpu_custom_call.1} parent=1 // pred_region
      %54 = dma.done [#allocation6], 256
    $region17: #{tpu_custom_call.1} parent=1 // pred_fallthru
      _
    %s55 = sadd.s32 0, 0
    %p56 = scmp.lt.s32.totalorder %s55, 0
    %s57 = scalar_select %p56, %s55, 0
    %s58 = smul.u32 2, %s57
    %s59 = sadd.s32 0, 0
    %p60 = scmp.lt.s32.totalorder %s59, 0
    %s61 = scalar_select %p60, %s59, 0
    %s62 = smul.u32 2, %s61
    %p63 = scmp.eq.s32.totalorder 0, 0
    // Predicated region
    $region18: #{tpu_custom_call.1} parent=1 // pred_check
      %p64 = pneg %p63
    $region19: #{tpu_custom_call.1} parent=1 // pred_check_branch
      %66 = sbr.rel (%p64) target = $region21
    $region20: #{tpu_custom_call.1} parent=1 // pred_region
      %67 = vst [vmem:[#allocation7] sm:$0xff] 0.0
      %68 = vst [vmem:[#allocation8] sm:$0xff] 0.0
    $region21: #{tpu_custom_call.1} parent=1 // pred_fallthru
      _
    %v69 = vld [vmem:[#allocation2] sm:$0xff]
    %v70 = vld [vmem:[#allocation2 + $0x8] sm:$0xff]
    %v71 = vld [vmem:[#allocation5] sm:$0xff]
    %v72 = vld [vmem:[#allocation5 + $0x8] sm:$0xff]
    %v73 = vld [vmem:[#allocation7] sm:$0xff]
    %v74 = vmul.f32 %v69, %v71
    %v75 = vmul.f32 %v70, %v72
    %v76 = vadd.f32 %v74, %v75
    %v77 = vadd.f32 %v73, %v76
    %78 = vst [vmem:[#allocation7] sm:$0xff] %v77
    %v79 = vld [vmem:[#allocation8] sm:$0xff]
    %v80 = vadd.f32 %v69, %v71
    %v81 = vadd.f32 %v70, %v72
    %v82 = vadd.f32 %v80, %v81
    %v83 = vadd.f32 %v79, %v82
    %84 = vst [vmem:[#allocation8] sm:$0xff] %v83
    // Predicated region
    $region22: #{tpu_custom_call.1} parent=1 // pred_check
      _
    $region23: #{tpu_custom_call.1} parent=1 // pred_check_branch
      %86 = sbr.rel (0) target = $region25
    $region24: #{tpu_custom_call.1} parent=1 // pred_region
      %s88 = ssub.s32 128, 128
      %89 = vsyncadd [#allocation4], %s88
      %s91 = sshll.u32 [#allocation7], 4
      %s92 = int_to_ptr.vmem [resolvable:$true] %s91
      %94 = dma.vmem_to_hbm [thread:$0]  %s92, 128, %s2, [#allocation4]
    $region25: #{tpu_custom_call.1} parent=1 // pred_fallthru
      _
    // Predicated region
    $region26: #{tpu_custom_call.1} parent=1 // pred_check
      _
    $region27: #{tpu_custom_call.1} parent=1 // pred_check_branch
      %96 = sbr.rel (0) target = $region29
    $region28: #{tpu_custom_call.1} parent=1 // pred_region
      %s98 = ssub.s32 128, 128
      %99 = vsyncadd [#allocation9], %s98
      %s101 = sshll.u32 [#allocation8], 4
      %s102 = int_to_ptr.vmem [resolvable:$true] %s101
      %104 = dma.vmem_to_hbm [thread:$0]  %s102, 128, %s3, [#allocation9]
    $region29: #{tpu_custom_call.1} parent=1 // pred_fallthru
      _
    // Predicated region
    $region30: #{tpu_custom_call.1} parent=1 // pred_check
      _
    $region31: #{tpu_custom_call.1} parent=1 // pred_check_branch
      %106 = sbr.rel (0) target = $region33
    $region32: #{tpu_custom_call.1} parent=1 // pred_region
      %107 = dma.done [#allocation4], 128
    $region33: #{tpu_custom_call.1} parent=1 // pred_fallthru
      _
    // Predicated region
    $region34: #{tpu_custom_call.1} parent=1 // pred_check
      _
    $region35: #{tpu_custom_call.1} parent=1 // pred_check_branch
      %109 = sbr.rel (0) target = $region37
    $region36: #{tpu_custom_call.1} parent=1 // pred_region
      %110 = dma.done [#allocation9], 128
    $region37: #{tpu_custom_call.1} parent=1 // pred_fallthru
      _
    %111 = vsyncpa [#allocation3], 1
    %112 = vsyncpa [#allocation6], 1
    %113 = vsyncpa [#allocation4], 1
    %114 = vsyncpa [#allocation9], 1

</llo_original>
